<compile_context>
chip_gen: v6e
topology: v6e:2x2x1
jax: 0.10.0
libtpu: 0.0.40
codegen_flags: <defaults>
</compile_context>

<pallas_src>
import functools

import jax
import jax.numpy as jnp
from jax.experimental import pallas as pl
from jax.experimental.pallas import tpu as pltpu


def _classifier_kernel(w_ref, b_ref, x_ref, o_ref):
    # w_ref: (NC, C_in), b_ref: (NC, 1), x_ref: (C_in, TL), o_ref: (NC, TL)
    # 1x1 conv == per-pixel matmul over channels:  W @ X  (+ bias broadcast).
    logits = jnp.dot(w_ref[...], x_ref[...], preferred_element_type=jnp.float32)
    logits = logits + b_ref[...]  # (NC, 1) broadcast down the lane axis

    # Softmax over the class axis (sublane axis 0) per spatial location.
    m = jnp.max(logits, axis=0, keepdims=True)
    e = jnp.exp(logits - m)
    denom = jnp.sum(e, axis=0, keepdims=True)
    # Exact reciprocal keeps the result within the 1e-5 reference tolerance
    # (approx=True would move the divide to the EUP slot but is lower precision).
    o_ref[...] = (e * pl.reciprocal(denom, approx=False)).astype(o_ref.dtype)


def _pick_spatial_tile(l_total, cap=4096):
    """Largest lane tile that is a multiple of 128, divides H*W, and is <= cap.

    Falls back to the full extent (always legal) when H*W is not 128-aligned.
    """
    if l_total % 128 == 0:
        tl = min(l_total, cap)
        tl -= tl % 128
        while l_total % tl != 0:
            tl -= 128
        return tl
    return l_total


@functools.partial(jax.jit, static_argnames=("tl",))
def classifier_block(x_nchw, weight, bias, *, tl=None):
    """Forward pass of ClassifierBlock.

    x_nchw : (N, C_in, H, W) float32
    weight : (num_classes, C_in) float32   (1x1 conv weight, squeezed)
    bias   : (num_classes,) float32
    returns: (N, num_classes, H, W) float32
    """
    n, c_in, h, w = x_nchw.shape
    num_classes = weight.shape[0]
    l_total = h * w

    if tl is None:
        tl = _pick_spatial_tile(l_total)
    assert l_total % tl == 0, "H*W must be divisible by the spatial tile"

    # Free reshapes only -- no NCHW<->NHWC transposes (they were a full HBM
    # round-trip larger than the kernel's own traffic).
    x3 = x_nchw.reshape(n, c_in, l_total)          # (N, C_in, H*W)
    b_col = bias.reshape(num_classes, 1)           # (NC, 1) sublane broadcast

    itemsize = 4  # float32
    flops = 2 * n * l_total * c_in * num_classes
    bytes_accessed = (
        x3.size + weight.size + b_col.size + n * num_classes * l_total
    ) * itemsize
    cost = pl.CostEstimate(
        flops=flops,
        transcendentals=n * num_classes * l_total,  # one exp per logit
        bytes_accessed=bytes_accessed,
    )

    out3 = pl.pallas_call(
        _classifier_kernel,
        out_shape=jax.ShapeDtypeStruct((n, num_classes, l_total), jnp.float32),
        grid_spec=pltpu.PrefetchScalarGridSpec(
            num_scalar_prefetch=0,
            grid=(n, l_total // tl),
            in_specs=[
                # Weight and bias: one tiny resident block, same for all steps.
                pl.BlockSpec((num_classes, c_in), lambda i, j: (0, 0)),
                pl.BlockSpec((num_classes, 1), lambda i, j: (0, 0)),
                # Per-image, per-spatial-tile slab of activations.
                pl.BlockSpec((None, c_in, tl), lambda i, j: (i, 0, j)),
            ],
            # Lane-dense output: last dim is the spatial tile (multiple of 128).
            out_specs=pl.BlockSpec((None, num_classes, tl), lambda i, j: (i, 0, j)),
        ),
        compiler_params=pltpu.CompilerParams(
            # Both axes independent -> shard across v7x's two TensorCores;
            # on v5e/v6e (1 TC) this is just a serial loop with big steps.
            dimension_semantics=("parallel", "parallel"),
        ),
        cost_estimate=cost,
    )(weight, b_col, x3)

    # (N, NC, H*W) -> (N, NC, H, W): pure reshape, no transpose.
    return out3.reshape(n, num_classes, h, w)


if __name__ == "__main__":
    # Small shapes consistent with the module: N=2, C_in=64, H=W=16, num_classes=10
    num_input_channels = 64
    num_classes = 10
    n, h, w = 2, 16, 16

    key = jax.random.PRNGKey(0)
    kx, kw, kb = jax.random.split(key, 3)

    x = jax.random.normal(kx, (n, num_input_channels, h, w), dtype=jnp.float32)

    # Deterministic synthetic parameter init (same shapes as nn.Conv2d(64, 10, (1,1), 1))
    fan_in = num_input_channels  # kernel is 1x1
    limit = 1.0 / jnp.sqrt(jnp.float32(fan_in))
    weight = jax.random.uniform(
        kw, (num_classes, num_input_channels), minval=-limit, maxval=limit, dtype=jnp.float32
    )
    bias = jax.random.uniform(
        kb, (num_classes,), minval=-limit, maxval=limit, dtype=jnp.float32
    )

    out = classifier_block(x, weight, bias)
    out = jax.block_until_ready(out)

    # Sanity checks against a pure-JAX reference (1x1 conv + channel softmax)
    ref_logits = jnp.einsum("nchw,kc->nkhw", x, weight) + bias[None, :, None, None]
    ref = jax.nn.softmax(ref_logits, axis=1)
    assert out.shape == (n, num_classes, h, w)
    assert jnp.allclose(out, ref, atol=1e-5, rtol=1e-5)
    # Softmax2d property: channel probabilities sum to 1 at every pixel
    assert jnp.allclose(jnp.sum(out, axis=1), 1.0, atol=1e-5)

    print("KERNEL_OK")
</pallas_src>

<mosaic_0001>
module attributes {stable_mosaic.version = 11 : i64} {
  func.func @_classifier_kernel(%arg0: i32, %arg1: i32, %arg2: memref<10x64xf32, #tpu.memory_space<vmem>>, %arg3: memref<10x1xf32, #tpu.memory_space<vmem>>, %arg4: memref<1x64x256xf32, #tpu.memory_space<vmem>>, %arg5: memref<1x10x256xf32, #tpu.memory_space<vmem>>) attributes {dimension_semantics = [#tpu.dimension_semantics<parallel>, #tpu.dimension_semantics<parallel>], iteration_bounds = array<i64: 2, 1>, scalar_prefetch = 0 : i64, scratch_operands = 0 : i64, tpu.core_type = #tpu.core_type<tc>, window_params = [{pipeline_mode = #tpu.pipeline_mode<synchronous>, transform_indices = @transform_0, window_bounds = array<i64: 10, 64>}, {pipeline_mode = #tpu.pipeline_mode<synchronous>, transform_indices = @transform_1, window_bounds = array<i64: 10, 1>}, {transform_indices = @transform_2, window_bounds = array<i64: 1, 64, 256>}, {transform_indices = @transform_3, window_bounds = array<i64: 1, 10, 256>}]} {
    %c0 = arith.constant 0 : index
    %c0_0 = arith.constant 0 : index
    %0 = vector.load %arg2[%c0, %c0_0] : memref<10x64xf32, #tpu.memory_space<vmem>>, vector<10x64xf32>
    %c0_1 = arith.constant 0 : index
    %c0_2 = arith.constant 0 : index
    %c0_3 = arith.constant 0 : index
    %1 = vector.load %arg4[%c0_1, %c0_2, %c0_3] : memref<1x64x256xf32, #tpu.memory_space<vmem>>, vector<1x64x256xf32>
    %2 = vector.shape_cast %1 : vector<1x64x256xf32> to vector<64x256xf32>
    %cst = arith.constant dense<0.000000e+00> : vector<10x256xf32>
    %3 = tpu.matmul %0, %2, %cst {dimension_numbers = #tpu.dot_dimension_numbers<[1], [0], [0], [1], [0, 0, 1, 1], [], []>} : vector<10x64xf32>, vector<64x256xf32>, vector<10x256xf32> -> vector<10x256xf32>
    %c0_4 = arith.constant 0 : index
    %c0_5 = arith.constant 0 : index
    %4 = vector.load %arg3[%c0_4, %c0_5] : memref<10x1xf32, #tpu.memory_space<vmem>>, vector<10x1xf32>
    %5 = vector.broadcast %4 : vector<10x1xf32> to vector<10x256xf32>
    %6 = arith.addf %3, %5 : vector<10x256xf32>
    %cst_6 = arith.constant dense<0xFF800000> : vector<256xf32>
    %7 = vector.multi_reduction <maximumf>, %6, %cst_6 [0] : vector<10x256xf32> to vector<256xf32>
    %8 = vector.shape_cast %7 : vector<256xf32> to vector<1x256xf32>
    %9 = vector.broadcast %8 : vector<1x256xf32> to vector<10x256xf32>
    %10 = arith.subf %6, %9 : vector<10x256xf32>
    %11 = math.exp %10 : vector<10x256xf32>
    %cst_7 = arith.constant dense<0.000000e+00> : vector<256xf32>
    %12 = vector.multi_reduction <add>, %11, %cst_7 [0] : vector<10x256xf32> to vector<256xf32>
    %13 = vector.shape_cast %12 : vector<256xf32> to vector<1x256xf32>
    %14 = tpu.reciprocal %13 : vector<1x256xf32> -> vector<1x256xf32>
    %15 = vector.broadcast %14 : vector<1x256xf32> to vector<10x256xf32>
    %16 = arith.mulf %11, %15 : vector<10x256xf32>
    %c0_8 = arith.constant 0 : index
    %c0_9 = arith.constant 0 : index
    %c0_10 = arith.constant 0 : index
    %17 = vector.load %arg5[%c0_8, %c0_9, %c0_10] : memref<1x10x256xf32, #tpu.memory_space<vmem>>, vector<1x10x256xf32>
    %18 = vector.shape_cast %17 : vector<1x10x256xf32> to vector<10x256xf32>
    %19 = vector.shape_cast %16 : vector<10x256xf32> to vector<1x10x256xf32>
    tpu.vector_store %arg5[%c0_8, %c0_9, %c0_10], %19 {strides = array<i32>} : memref<1x10x256xf32, #tpu.memory_space<vmem>>, vector<1x10x256xf32>,
    return
  }
  func.func @transform_0(%arg0: i32, %arg1: i32) -> (i32, i32) {
    %c0_i32 = arith.constant 0 : i32
    %c0_i32_0 = arith.constant 0 : i32
    %c0_i32_1 = arith.constant 0 : i32
    return %c0_i32, %c0_i32_0 : i32, i32
  }
  func.func @transform_1(%arg0: i32, %arg1: i32) -> (i32, i32) {
    %c0_i32 = arith.constant 0 : i32
    %c0_i32_0 = arith.constant 0 : i32
    %c0_i32_1 = arith.constant 0 : i32
    return %c0_i32, %c0_i32_0 : i32, i32
  }
  func.func @transform_2(%arg0: i32, %arg1: i32) -> (i32, i32, i32) {
    %c0_i32 = arith.constant 0 : i32
    %c0_i32_0 = arith.constant 0 : i32
    return %arg0, %c0_i32, %arg1 : i32, i32, i32
  }
  func.func @transform_3(%arg0: i32, %arg1: i32) -> (i32, i32, i32) {
    %c0_i32 = arith.constant 0 : i32
    %c0_i32_0 = arith.constant 0 : i32
    return %arg0, %c0_i32, %arg1 : i32, i32, i32
  }
}

</mosaic_0001>

<llo_original>
// kernel: classifier_block.1
$region0: #{classifier_block.1}
  #allocation0 [shape = 'u32[]', space=smem, size = 0x4, offset = 0x4, fixed_abs, tag = 'smem constant byte address 0x4 - core index']
  #allocation1 [shape = 'u32[144,128]{1,0:T(1,128)}', space=vmem, size = 0x12000, scoped, tag = 'internal scratch']
  %s0 = inlined_call_operand.vmem [shape: f32[10,64], index: 0, kind: input, shape index: {}]
  %s1 = inlined_call_operand.vmem [shape: f32[10,1], index: 1, kind: input, shape index: {}]
  %s2 = inlined_call_operand.vmem [shape: f32[2,64,256], index: 2, kind: input, shape index: {}]
  %s3 = inlined_call_operand.vmem [shape: f32[2,10,256], index: 3, kind: output, shape index: {}]
  %s4 = sld [smem:[#allocation0]]
  $region45: #{classifier_block.1} parent=0
    _
  %s6 = ssub.s32 1, %s4
  %s7 = scalar_select 0, %s6, %s4
  loop: start=0, step=1, limit=4
  $region2: #{classifier_block.1} parent=0 // loop_pre_header
    _
  $region3: #{classifier_block.1} parent=0 // loop_header
    %s9 = sphi 0, %s13
    %p10 = scmp.ge.s32.totalorder %s9, 4
    %s16 = sphi 0, %s28
    %s17 = sphi 0, %s24
    %s18 = sphi 0, %s16
    %s19 = sphi 0, %s17
    %s20 = sphi 0, %s18
    %s21 = sphi 0, %s19
    %s29 = sphi 0, %s29
    %s31 = sphi 0, %s29
    %s32 = sphi 0, %s31
    %s46 = sphi 0, %s32
    %s50 = sphi 0, %s50
    %s52 = sphi 0, %s50
    %s53 = sphi 0, %s52
    %s67 = sphi 0, %s53
    %s75 = sphi 0, %s77
    %s78 = sphi 0, %s75
    %s79 = sphi 0, %s78
    %s95 = sphi 0, %s79
    %s103 = sphi 0, %s105
    %s106 = sphi 0, %s103
    %s107 = sphi 0, %s106
    %s123 = sphi 0, %s107
  $region4: #{classifier_block.1} parent=0 // loop_header_branch
    %12 = sbr.rel (%p10) target = $region8
  $region5: #{classifier_block.1} parent=0 // loop_body
    %s14 = ssub.s32 %s9, 1
    %s15 = ssub.s32 %s9, 2
    %s22 = sadd.s32 1, %s17
    %p23 = scmp.ge.s32.totalorder %s22, 1
    %s24 = scalar_select %p23, 0, %s22
    %s25 = sadd.s32 1, %s16
    %s26 = scalar_select %p23, %s25, %s16
    %p27 = scmp.ge.s32.totalorder %s26, 2
    %s28 = scalar_select %p27, 0, %s26
    %s30 = sadd.s32 %s29, 1
    %p33 = scmp.eq.s32.totalorder %s9, 1
    %p34 = scmp.ne.s32.totalorder %s29, %s31
    %p35 = scmp.eq.s32.totalorder %s9, 0
    %p36 = por %p34, %p35
    %p37 = scmp.ne.s32.totalorder %s29, %s31
    %p38 = scmp.eq.s32.totalorder %s14, 1
    %p39 = por %p37, %p38
    %p40 = scmp.ne.s32.totalorder %s31, %s32
    %p41 = scmp.eq.s32.totalorder %s14, 0
    %p42 = por %p40, %p41
    %p43 = scmp.ne.s32.totalorder %s31, %s32
    %p44 = scmp.eq.s32.totalorder %s15, 1
    %p45 = por %p43, %p44
    %p47 = scmp.ne.s32.totalorder %s32, %s46
    %p48 = scmp.eq.s32.totalorder %s15, 0
    %p49 = por %p47, %p48
    %s51 = sadd.s32 %s50, 1
    %p54 = scmp.eq.s32.totalorder %s9, 1
    %p55 = scmp.ne.s32.totalorder %s50, %s52
    %p56 = scmp.eq.s32.totalorder %s9, 0
    %p57 = por %p55, %p56
    %p58 = scmp.ne.s32.totalorder %s50, %s52
    %p59 = scmp.eq.s32.totalorder %s14, 1
    %p60 = por %p58, %p59
    %p61 = scmp.ne.s32.totalorder %s52, %s53
    %p62 = scmp.eq.s32.totalorder %s14, 0
    %p63 = por %p61, %p62
    %p64 = scmp.ne.s32.totalorder %s52, %s53
    %p65 = scmp.eq.s32.totalorder %s15, 1
    %p66 = por %p64, %p65
    %p68 = scmp.ne.s32.totalorder %s53, %s67
    %p69 = scmp.eq.s32.totalorder %s15, 0
    %p70 = por %p68, %p69
    %s71 = ssub.s32 %s16, %s28
    %s72 = ssub.s32 %s17, %s24
    %s73 = sor.u32 %s71, %s72
    %p74 = scmp.eq.s32.totalorder %s73, 0
    %s76 = sadd.s32 %s75, 1
    %s77 = scalar_select %p74, %s75, %s76
    %p80 = pneg %p74
    %p81 = scmp.eq.s32.totalorder %s9, 1
    %p82 = por %p80, %p81
    %p83 = scmp.ne.s32.totalorder %s75, %s78
    %p84 = scmp.eq.s32.totalorder %s9, 0
    %p85 = por %p83, %p84
    %p86 = scmp.ne.s32.totalorder %s75, %s78
    %p87 = scmp.eq.s32.totalorder %s14, 1
    %p88 = por %p86, %p87
    %p89 = scmp.ne.s32.totalorder %s78, %s79
    %p90 = scmp.eq.s32.totalorder %s14, 0
    %p91 = por %p89, %p90
    %p92 = scmp.ne.s32.totalorder %s78, %s79
    %p93 = scmp.eq.s32.totalorder %s15, 1
    %p94 = por %p92, %p93
    %p96 = scmp.ne.s32.totalorder %s79, %s95
    %p97 = scmp.eq.s32.totalorder %s15, 0
    %p98 = por %p96, %p97
    %s99 = ssub.s32 %s16, %s28
    %s100 = ssub.s32 %s17, %s24
    %s101 = sor.u32 %s99, %s100
    %p102 = scmp.eq.s32.totalorder %s101, 0
    %s104 = sadd.s32 %s103, 1
    %s105 = scalar_select %p102, %s103, %s104
    %p108 = pneg %p102
    %p109 = scmp.eq.s32.totalorder %s9, 1
    %p110 = por %p108, %p109
    %p111 = scmp.ne.s32.totalorder %s103, %s106
    %p112 = scmp.eq.s32.totalorder %s9, 0
    %p113 = por %p111, %p112
    %p114 = scmp.ne.s32.totalorder %s103, %s106
    %p115 = scmp.eq.s32.totalorder %s14, 1
    %p116 = por %p114, %p115
    %p117 = scmp.ne.s32.totalorder %s106, %s107
    %p118 = scmp.eq.s32.totalorder %s14, 0
    %p119 = por %p117, %p118
    %p120 = scmp.ne.s32.totalorder %s106, %s107
    %p121 = scmp.eq.s32.totalorder %s15, 1
    %p122 = por %p120, %p121
    %p124 = scmp.ne.s32.totalorder %s107, %s123
    %p125 = scmp.eq.s32.totalorder %s15, 0
    %p126 = por %p124, %p125
    %p127 = scmp.le.s32.totalorder 1, %s9
    %p128 = scmp.lt.s32.totalorder %s9, 3
    %p129 = pnand %p127, %p128
    %p130 = pneg %p129
    // Predicated region
    $region9: #{classifier_block.1} parent=5 // pred_check
      _
    $region10: #{classifier_block.1} parent=5 // pred_check_branch
      %132 = sbr.rel (%p129) target = $region12
    $region11: #{classifier_block.1} parent=5 // pred_region
      %s133 = ssub.s32 %s9, 1
      // Predicated region
      $region13: #{classifier_block.1} parent=11 // pred_check
        %p134 = pneg %p42
      $region14: #{classifier_block.1} parent=11 // pred_check_branch
        %136 = sbr.rel (%p134) target = $region16
      $region15: #{classifier_block.1} parent=11 // pred_region
        _
      $region16: #{classifier_block.1} parent=11 // pred_fallthru
        _
      // Predicated region
      $region17: #{classifier_block.1} parent=11 // pred_check
        %p137 = pneg %p63
      $region18: #{classifier_block.1} parent=11 // pred_check_branch
        %139 = sbr.rel (%p137) target = $region20
      $region19: #{classifier_block.1} parent=11 // pred_region
        _
      $region20: #{classifier_block.1} parent=11 // pred_fallthru
        _
    $region12: #{classifier_block.1} parent=5 // pred_fallthru
      _
    %p140 = scmp.lt.s32.totalorder %s9, 2
    // Predicated region
    $region21: #{classifier_block.1} parent=5 // pred_check
      %p141 = pneg %p140
    $region22: #{classifier_block.1} parent=5 // pred_check_branch
      %143 = sbr.rel (%p141) target = $region24
    $region23: #{classifier_block.1} parent=5 // pred_region
      // Predicated region
      $region25: #{classifier_block.1} parent=23 // pred_check
        %p144 = pneg %p85
      $region26: #{classifier_block.1} parent=23 // pred_check_branch
        %146 = sbr.rel (%p144) target = $region28
      $region27: #{classifier_block.1} parent=23 // pred_region
        %s147 = smul.u32 2, %s17
        %p148 = scmp.lt.s32.totalorder %s16, 1
        %s149 = scalar_select %p148, %s16, 1
        %p150 = scmp.lt.s32.totalorder %s147, 1
        %s151 = scalar_select %p150, %s147, 1
        %s152 = smul.addr %s149, 16
        %s153 = sadd.s32 %s151, %s152
        %s154 = smul.addr %s153, 8
        %s155 = scalar_lea.vmem %s2, %s154
        %s156 = smul.u32 2, %s17
      $region28: #{classifier_block.1} parent=23 // pred_fallthru
        _
    $region24: #{classifier_block.1} parent=5 // pred_fallthru
      _
    %p157 = scmp.le.s32.totalorder 1, %s9
    %p158 = scmp.lt.s32.totalorder %s9, 3
    %p159 = pnand %p157, %p158
    %p160 = pneg %p159
    // Predicated region
    $region29: #{classifier_block.1} parent=5 // pred_check
      _
    $region30: #{classifier_block.1} parent=5 // pred_check_branch
      %162 = sbr.rel (%p159) target = $region32
    $region31: #{classifier_block.1} parent=5 // pred_region
      %s163 = ssub.s32 %s9, 1
      %p164 = pneg %p42
      %p165 = pneg %p39
      %p166 = pneg %p63
      %p167 = pneg %p60
      %s168 = smul.u32 2, %s19
      %p169 = scmp.lt.s32.totalorder %s18, 1
      %s170 = scalar_select %p169, %s18, 1
      %p171 = scmp.lt.s32.totalorder %s168, 1
      %s172 = scalar_select %p171, %s168, 1
      %s173 = smul.addr %s170, 16
      %s174 = sadd.s32 %s172, %s173
      %s175 = smul.addr %s174, 8
      %s176 = scalar_lea.vmem %s2, %s175
      %p177 = pneg %p91
      %p178 = pneg %p88
      %p179 = pneg %p119
      %p180 = pneg %p116
      %s181 = smul.u32 2, %s19
      %p182 = scmp.lt.s32.totalorder %s18, 1
      %s183 = scalar_select %p182, %s18, 1
      %p184 = scmp.lt.s32.totalorder %s181, 1
      %s185 = scalar_select %p184, %s181, 1
      %s186 = smul.addr %s183, 4
      %s187 = sadd.s32 %s185, %s186
      %s188 = smul.addr %s187, 8
      %s189 = scalar_lea.vmem %s3, %s188
      %s190 = smul.u32 2, %s19
      %p191 = scmp.lt.s32.totalorder %s18, 1
      %s192 = scalar_select %p191, %s18, 1
      %p193 = scmp.lt.s32.totalorder %s190, 1
      %s194 = scalar_select %p193, %s190, 1
      %s195 = smul.addr %s192, 16
      %s196 = sadd.s32 %s194, %s195
      %s197 = smul.addr %s196, 8
      %s198 = scalar_lea.vmem %s2, %s197
      %s199 = smul.u32 2, %s19
      %s200 = smul.u32 2, %s19
      %p201 = scmp.lt.s32.totalorder %s18, 1
      %s202 = scalar_select %p201, %s18, 1
      %p203 = scmp.lt.s32.totalorder %s200, 1
      %s204 = scalar_select %p203, %s200, 1
      %s205 = smul.addr %s202, 4
      %s206 = sadd.s32 %s204, %s205
      %s207 = smul.addr %s206, 8
      %s208 = scalar_lea.vmem %s3, %s207
      %s209 = smul.u32 2, %s19
      %v210 = vld [vmem:[%s0] sm:$0xff]
      %v211 = vld [vmem:[%s0 + $0x8] sm:$0x3]
      %v212 = vld [vmem:[%s198] sm:$0xff]
      %v213 = vld [vmem:[%s198 + $0x8] sm:$0xff]
      %v214 = vld [vmem:[%s198 + $0x10] sm:$0xff]
      %v215 = vld [vmem:[%s198 + $0x18] sm:$0xff]
      %v216 = vld [vmem:[%s198 + $0x20] sm:$0xff]
      %v217 = vld [vmem:[%s198 + $0x28] sm:$0xff]
      %v218 = vld [vmem:[%s198 + $0x30] sm:$0xff]
      %v219 = vld [vmem:[%s198 + $0x38] sm:$0xff]
      %v220 = vld [vmem:[%s198 + $0x40] sm:$0xff]
      %v221 = vld [vmem:[%s198 + $0x48] sm:$0xff]
      %v222 = vld [vmem:[%s198 + $0x50] sm:$0xff]
      %v223 = vld [vmem:[%s198 + $0x58] sm:$0xff]
      %v224 = vld [vmem:[%s198 + $0x60] sm:$0xff]
      %v225 = vld [vmem:[%s198 + $0x68] sm:$0xff]
      %v226 = vld [vmem:[%s198 + $0x70] sm:$0xff]
      %v227 = vld [vmem:[%s198 + $0x78] sm:$0xff]
      %v228 = vld [vmem:[%s1] sm:$0xff]
      %v229 = vld [vmem:[%s1 + $0x8] sm:$0x3]
      %231 = vset.pattern.permute.xlu0 0
      %232 = vperm.xlu0 %231, %v228
      %v233 = vpop.permute.xlu0 %232
      %236 = vset.pattern.permute.xlu0 0
      %237 = vperm.xlu0 %236, %v229
      %v238 = vpop.permute.xlu0 %237
      %vm240 = vcmask 523264
      %v242 = vsel %vm240, %v210, 0
      %v245 = vsel %vm240, %v211, 0
      %247 = vmatprep.subr.mxu0 0.0
      %248 = vmatpush1.msra.mxu0 0.0
      %249 = vmatprep.subr.mxu0 0.0
      %250 = vmatpush1.msra.mxu0 0.0
      %251 = vmatprep.subr.mxu0 0.0
      %252 = vmatpush1.msra.mxu0 0.0
      %253 = vmatprep.subr.mxu0 0.0
      %254 = vmatpush1.msra.mxu0 0.0
      %255 = vmatprep.subr.mxu0 0.0
      %256 = vmatpush1.msra.mxu0 0.0
      %257 = vmatprep.subr.mxu0 0.0
      %258 = vmatpush1.msra.mxu0 0.0
      %259 = vmatprep.subr.mxu0 0.0
      %260 = vmatpush1.msra.mxu0 0.0
      %261 = vmatprep.subr.mxu0 0.0
      %262 = vmatpush1.msra.mxu0 0.0
      %263 = vmatprep.subr.mxu0 %v227
      %264 = vmatpush1.msra.mxu0 %v226
      %265 = vmatprep.subr.mxu0 %v225
      %266 = vmatpush1.msra.mxu0 %v224
      %267 = vmatprep.subr.mxu0 %v223
      %268 = vmatpush1.msra.mxu0 %v222
      %269 = vmatprep.subr.mxu0 %v221
      %270 = vmatpush1.msra.mxu0 %v220
      %271 = vmatprep.subr.mxu0 %v219
      %272 = vmatpush1.msra.mxu0 %v218
      %273 = vmatprep.subr.mxu0 %v217
      %274 = vmatpush1.msra.mxu0 %v216
      %275 = vmatprep.subr.mxu0 %v215
      %276 = vmatpush1.msra.mxu0 %v214
      %277 = vmatprep.subr.mxu0 %v213
      %278 = vmatpush1.msra.mxu0 %v212
      %279 = vmatprep.subr.mxu0 0.0
      %280 = vmatpush2.msra.mxu0 0.0
      %281 = vmatprep.subr.mxu0 0.0
      %282 = vmatpush2.msra.mxu0 0.0
      %283 = vmatprep.subr.mxu0 0.0
      %284 = vmatpush2.msra.mxu0 0.0
      %285 = vmatprep.subr.mxu0 0.0
      %286 = vmatpush2.msra.mxu0 0.0
      %287 = vmatprep.subr.mxu0 0.0
      %288 = vmatpush2.msra.mxu0 0.0
      %289 = vmatprep.subr.mxu0 0.0
      %290 = vmatpush2.msra.mxu0 0.0
      %291 = vmatprep.subr.mxu0 0.0
      %292 = vmatpush2.msra.mxu0 0.0
      %293 = vmatprep.subr.mxu0 0.0
      %294 = vmatpush2.msra.mxu0 0.0
      %295 = vmatprep.subr.mxu0 0.0
      %296 = vmatpush2.msra.mxu0 0.0
      %297 = vmatprep.subr.mxu0 0.0
      %298 = vmatpush2.msra.mxu0 0.0
      %299 = vmatprep.subr.mxu0 0.0
      %300 = vmatpush2.msra.mxu0 0.0
      %301 = vmatprep.subr.mxu0 0.0
      %302 = vmatpush2.msra.mxu0 0.0
      %303 = vmatprep.subr.mxu0 0.0
      %304 = vmatpush2.msra.mxu0 0.0
      %305 = vmatprep.subr.mxu0 0.0
      %306 = vmatpush2.msra.mxu0 0.0
      %307 = vmatprep.subr.mxu0 0.0
      %308 = vmatpush2.msra.mxu0 0.0
      %309 = vmatprep.subr.mxu0 0.0
      %310 = vmatpush2.msra.mxu0 0.0
      %311 = vmatprep.mubr.f32.mxu0 0.0
      %312 = vmatmul.mubr.f32.gmra.mxu0 %v242
      %v313 = vpop.f32.mrf.mxu0
      %v314 = vadd.f32 %v233, %v313
      %v315 = vpop.f32.mrf.mxu0
      %v316 = vadd.f32 %v233, %v315
      %317 = vmatprep.mubr.f32.mxu0 0.0
      %318 = vmatmul.mubr.f32.gmra.mxu0 %v245
      %v319 = vpop.f32.mrf.mxu0
      %v320 = vadd.f32 %v238, %v319
      %v321 = vpop.f32.mrf.mxu0
      %v322 = vadd.f32 %v238, %v321
      %323 = vdwg.mxu0
      %vm324 = vcmask 1041408
      %v325 = vsel %vm324, %v320, -inf
      %v326 = vmax.f32 %v314, %v325
      %v327 = vrot.slane %v326, 4
      %v328 = vmax.f32 %v326, %v327
      %v329 = vrot.slane %v328, 2
      %v330 = vmax.f32 %v328, %v329
      %v331 = vrot.slane %v330, 1
      %v332 = vmax.f32 %v330, %v331
      %v333 = vsel %vm324, %v322, -inf
      %v334 = vmax.f32 %v316, %v333
      %v335 = vrot.slane %v334, 4
      %v336 = vmax.f32 %v334, %v335
      %v337 = vrot.slane %v336, 2
      %v338 = vmax.f32 %v336, %v337
      %v339 = vrot.slane %v338, 1
      %v340 = vmax.f32 %v338, %v339
      %v341 = vsub.f32 %v314, %v332
      %v342 = vsub.f32 %v316, %v340
      %v343 = vsub.f32 %v320, %v332
      %v344 = vsub.f32 %v322, %v340
      %v345 = vmul.f32 %v341, 1.442695
      %v346 = vpow.pop %v345
      %v347 = vmul.f32 %v342, 1.442695
      %v348 = vpow.pop %v347
      %v349 = vmul.f32 %v343, 1.442695
      %v350 = vpow.pop %v349
      %v351 = vmul.f32 %v344, 1.442695
      %v352 = vpow.pop %v351
      %v353 = vsel %vm324, %v350, 0.0
      %v354 = vadd.f32 %v346, %v353
      %v355 = vrot.slane %v354, 4
      %v356 = vadd.f32 %v354, %v355
      %v357 = vrot.slane %v356, 2
      %v358 = vadd.f32 %v356, %v357
      %v359 = vrot.slane %v358, 1
      %v360 = vadd.f32 %v358, %v359
      %v361 = vsel %vm324, %v352, 0.0
      %v362 = vadd.f32 %v348, %v361
      %v363 = vrot.slane %v362, 4
      %v364 = vadd.f32 %v362, %v363
      %v365 = vrot.slane %v364, 2
      %v366 = vadd.f32 %v364, %v365
      %v367 = vrot.slane %v366, 1
      %v368 = vadd.f32 %v366, %v367
      %v369 = vrcp.pop %v360
      %v370 = vrcp.pop %v368
      %v371 = vmul.f32 %v346, %v369
      %v372 = vmul.f32 %v348, %v370
      %v373 = vmul.f32 %v350, %v369
      %v374 = vmul.f32 %v352, %v370
      %375 = vst [vmem:[%s208] sm:$0xff] %v371
      %376 = vst [vmem:[%s208 + $0x8] sm:$0xff] %v372
      %377 = vst [vmem:[%s208 + $0x10] sm:$0x3] %v373
      %378 = vst [vmem:[%s208 + $0x18] sm:$0x3] %v374
      %s379 = smul.u32 2, %s19
      %p380 = scmp.lt.s32.totalorder %s18, 1
      %s381 = scalar_select %p380, %s18, 1
      %p382 = scmp.lt.s32.totalorder %s379, 1
      %s383 = scalar_select %p382, %s379, 1
      %s384 = smul.addr %s381, 4
      %s385 = sadd.s32 %s383, %s384
      %s386 = smul.addr %s385, 8
      %s387 = scalar_lea.vmem %s3, %s386
      // Predicated region
      $region33: #{classifier_block.1} parent=31 // pred_check
        %p388 = pneg %p116
      $region34: #{classifier_block.1} parent=31 // pred_check_branch
        %390 = sbr.rel (%p388) target = $region36
      $region35: #{classifier_block.1} parent=31 // pred_region
        %s391 = smul.u32 2, %s19
      $region36: #{classifier_block.1} parent=31 // pred_fallthru
        _
    $region32: #{classifier_block.1} parent=5 // pred_fallthru
      _
    %p392 = scmp.le.s32.totalorder 2, %s9
    // Predicated region
    $region37: #{classifier_block.1} parent=5 // pred_check
      %p393 = pneg %p392
    $region38: #{classifier_block.1} parent=5 // pred_check_branch
      %395 = sbr.rel (%p393) target = $region40
    $region39: #{classifier_block.1} parent=5 // pred_region
      %s396 = ssub.s32 %s9, 2
      // Predicated region
      $region41: #{classifier_block.1} parent=39 // pred_check
        %p397 = pneg %p122
      $region42: #{classifier_block.1} parent=39 // pred_check_branch
        %399 = sbr.rel (%p397) target = $region44
      $region43: #{classifier_block.1} parent=39 // pred_region
        %s400 = smul.u32 2, %s21
        %p401 = scmp.lt.s32.totalorder %s20, 1
        %s402 = scalar_select %p401, %s20, 1
        %p403 = scmp.lt.s32.totalorder %s400, 1
        %s404 = scalar_select %p403, %s400, 1
        %s405 = smul.addr %s402, 4
        %s406 = sadd.s32 %s404, %s405
        %s407 = smul.addr %s406, 8
        %s408 = scalar_lea.vmem %s3, %s407
      $region44: #{classifier_block.1} parent=39 // pred_fallthru
        _
    $region40: #{classifier_block.1} parent=5 // pred_fallthru
      _
  $region6: #{classifier_block.1} parent=0 // loop_footer
    %s13 = sadd.s32 1, %s9
  $region7: #{classifier_block.1} parent=0 // loop_footer_branch
    %8 = sbr.rel target = $region3
  $region8: #{classifier_block.1} parent=0 // loop_exit
    _

</llo_original>
